<compile_context>
chip_gen: v5e
topology: v5e:2x2
jax: 0.10.0
libtpu: 0.0.40
codegen_flags: <defaults>
</compile_context>

<pallas_src>
import functools

import jax
import jax.numpy as jnp
from jax.experimental import pallas as pl
from jax.experimental.pallas import tpu as pltpu


def _ls_ce_kernel(preds_ref, target_ref, out_ref, *, n_rows_total, tile_n):
    # (TILE_N, C) tile; keep all math in f32 (v5e has no bf16 VPU/EUP path).
    logits = preds_ref[...].astype(jnp.float32)
    tile_rows, n_classes = logits.shape

    # Numerically stable log-sum-exp along the class (lane) axis.
    m = jnp.max(logits, axis=-1, keepdims=True)                     # (TILE_N, 1)
    shifted = logits - m                                            # (TILE_N, C)
    lse = jnp.log(jnp.sum(jnp.exp(shifted), axis=-1, keepdims=True))  # (TILE_N, 1)

    # sum over classes of log_softmax = sum(shifted) - C * lse  (no log_preds temp)
    sum_shifted = jnp.sum(shifted, axis=-1, keepdims=True)          # (TILE_N, 1)
    sum_lp = sum_shifted - jnp.float32(n_classes) * lse             # (TILE_N, 1)

    # Picked log prob: log_softmax[i, target[i]] = shifted[i, target[i]] - lse[i].
    # Exactly one lane is selected per row, so a masked lane-sum is an exact gather.
    tgt = target_ref[...]                                           # (TILE_N, 1) int32
    class_ids = jax.lax.broadcasted_iota(jnp.int32, shifted.shape, 1)
    picked_shifted = jnp.sum(
        jnp.where(class_ids == tgt, shifted, jnp.float32(0.0)),
        axis=-1, keepdims=True)                                     # (TILE_N, 1)
    picked = picked_shifted - lse                                   # (TILE_N, 1)

    # Mask rows that fall past the true N (last partial tile padding).
    row_start = pl.program_id(0) * tile_n
    row_ids = row_start + jax.lax.broadcasted_iota(
        jnp.int32, (tile_rows, 1), 0)
    valid = row_ids < n_rows_total

    partial_loss = jnp.sum(jnp.where(valid, -sum_lp, jnp.float32(0.0)))
    partial_nll = jnp.sum(jnp.where(valid, -picked, jnp.float32(0.0)))

    # Lane-dense (8, 128) partial-sum block: [0, 0] = loss partial, [0, 1] = nll
    # partial, everything else zero.  Avoids masked vst / 1-lane VMEM outputs.
    row_iota = jax.lax.broadcasted_iota(jnp.int32, out_ref.shape, 0)
    lane_iota = jax.lax.broadcasted_iota(jnp.int32, out_ref.shape, 1)
    is_row0 = row_iota == 0
    out_ref[...] = jnp.where(
        is_row0 & (lane_iota == 0), partial_loss,
        jnp.where(is_row0 & (lane_iota == 1), partial_nll, jnp.float32(0.0)))


def _choose_tile_n(n, c):
    """Pick a row-tile size: big enough to hide the ~0.35us/step overhead,
    small enough that 2x double-buffered (TILE_N, C) f32 tiles fit scoped VMEM
    comfortably on all generations (incl. v7x's smaller VMEM)."""
    budget_bytes_per_buffer = 4 * 1024 * 1024          # 4 MiB per input buffer
    rows = budget_bytes_per_buffer // max(1, 4 * c)
    rows = max(8, min(int(rows), 1024))
    rows = (rows // 8) * 8                              # sublane alignment
    if rows >= n:
        return n                                        # single full block
    return max(8, rows)


def label_smoothing_cross_entropy(preds, target, epsilon=0.1):
    """preds: (N, C) float, target: (N,) int. Returns scalar (mean reduction)."""
    n, c = preds.shape
    target2d = target.astype(jnp.int32).reshape(n, 1)

    tile_n = _choose_tile_n(n, c)
    num_tiles = pl.cdiv(n, tile_n)

    cost = pl.CostEstimate(
        flops=6 * n * c,
        transcendentals=n * c,
        bytes_accessed=preds.dtype.itemsize * n * c + 4 * n
        + 4 * num_tiles * 8 * 128,
    )

    partials = pl.pallas_call(
        functools.partial(_ls_ce_kernel, n_rows_total=n, tile_n=tile_n),
        out_shape=jax.ShapeDtypeStruct((num_tiles, 8, 128), jnp.float32),
        grid=(num_tiles,),
        in_specs=[
            pl.BlockSpec((tile_n, c), lambda i: (i, 0)),
            pl.BlockSpec((tile_n, 1), lambda i: (i, 0)),
        ],
        out_specs=pl.BlockSpec((None, 8, 128), lambda i: (i, 0, 0)),
        compiler_params=pltpu.CompilerParams(
            dimension_semantics=("parallel",),
        ),
        cost_estimate=cost,
    )(preds, target2d)

    # Tiny final reduction + epsilon combine in plain JAX (negligible cost;
    # keeps the grid axis parallel so both v7x TensorCores can be used).
    loss_sum = jnp.sum(partials[:, 0, 0])
    nll_sum = jnp.sum(partials[:, 0, 1])
    loss = loss_sum / n
    nll = nll_sum / n
    return epsilon * (loss / c) + (1.0 - epsilon) * nll


def _reference(preds, target, epsilon=0.1):
    log_preds = jax.nn.log_softmax(preds.astype(jnp.float32), axis=-1)
    loss = jnp.mean(-jnp.sum(log_preds, axis=-1))
    nll = jnp.mean(-jnp.take_along_axis(log_preds, target[:, None], axis=-1))
    n = preds.shape[-1]
    return epsilon * (loss / n) + (1.0 - epsilon) * nll


if __name__ == "__main__":
    key = jax.random.PRNGKey(0)
    k1, k2 = jax.random.split(key)
    N, C = 8, 32
    preds = jax.random.normal(k1, (N, C), dtype=jnp.float32)
    target = jax.random.randint(k2, (N,), 0, C, dtype=jnp.int32)

    out = label_smoothing_cross_entropy(preds, target, epsilon=0.1)
    out = jax.block_until_ready(out)

    ref = _reference(preds, target, epsilon=0.1)
    assert jnp.allclose(out, ref, atol=1e-5, rtol=1e-5), (out, ref)
    print("KERNEL_OK")
</pallas_src>

<mosaic_0001>
module attributes {stable_mosaic.version = 11 : i64} {
  func.func @_ls_ce_kernel(%arg0: i32, %arg1: memref<8x32xf32, #tpu.memory_space<vmem>>, %arg2: memref<8x1xi32, #tpu.memory_space<vmem>>, %arg3: memref<1x8x128xf32, #tpu.memory_space<vmem>>) attributes {dimension_semantics = [#tpu.dimension_semantics<parallel>], iteration_bounds = array<i64: 1>, scalar_prefetch = 0 : i64, scratch_operands = 0 : i64, tpu.core_type = #tpu.core_type<tc>, window_params = [{transform_indices = @transform_0, window_bounds = array<i64: 8, 32>}, {transform_indices = @transform_1, window_bounds = array<i64: 8, 1>}, {transform_indices = @transform_2, window_bounds = array<i64: 1, 8, 128>}]} {
    %c0 = arith.constant 0 : index
    %c0_0 = arith.constant 0 : index
    %0 = vector.load %arg1[%c0, %c0_0] : memref<8x32xf32, #tpu.memory_space<vmem>>, vector<8x32xf32>
    %cst = arith.constant dense<0xFF800000> : vector<8xf32>
    %1 = vector.multi_reduction <maximumf>, %0, %cst [1] : vector<8x32xf32> to vector<8xf32>
    %2 = vector.shape_cast %1 : vector<8xf32> to vector<8x1xf32>
    %3 = vector.broadcast %2 : vector<8x1xf32> to vector<8x32xf32>
    %4 = arith.subf %0, %3 : vector<8x32xf32>
    %5 = math.exp %4 : vector<8x32xf32>
    %cst_1 = arith.constant dense<0.000000e+00> : vector<8xf32>
    %6 = vector.multi_reduction <add>, %5, %cst_1 [1] : vector<8x32xf32> to vector<8xf32>
    %7 = vector.shape_cast %6 : vector<8xf32> to vector<8x1xf32>
    %8 = math.log %7 : vector<8x1xf32>
    %cst_2 = arith.constant dense<0.000000e+00> : vector<8xf32>
    %9 = vector.multi_reduction <add>, %4, %cst_2 [1] : vector<8x32xf32> to vector<8xf32>
    %10 = vector.shape_cast %9 : vector<8xf32> to vector<8x1xf32>
    %cst_3 = arith.constant 3.200000e+01 : f32
    %11 = vector.broadcast %cst_3 : f32 to vector<8x1xf32>
    %12 = arith.mulf %11, %8 : vector<8x1xf32>
    %13 = arith.subf %10, %12 : vector<8x1xf32>
    %c0_4 = arith.constant 0 : index
    %c0_5 = arith.constant 0 : index
    %14 = vector.load %arg2[%c0_4, %c0_5] : memref<8x1xi32, #tpu.memory_space<vmem>>, vector<8x1xi32>
    %15 = tpu.iota {dimensions = array<i32: 1>} : vector<8x32xi32>
    %16 = vector.broadcast %14 : vector<8x1xi32> to vector<8x32xi32>
    %17 = arith.cmpi eq, %15, %16 : vector<8x32xi32>
    %cst_6 = arith.constant 0.000000e+00 : f32
    %18 = vector.broadcast %cst_6 : f32 to vector<8x32xf32>
    %19 = arith.select %17, %4, %18 : vector<8x32xi1>, vector<8x32xf32>
    %cst_7 = arith.constant dense<0.000000e+00> : vector<8xf32>
    %20 = vector.multi_reduction <add>, %19, %cst_7 [1] : vector<8x32xf32> to vector<8xf32>
    %21 = vector.shape_cast %20 : vector<8xf32> to vector<8x1xf32>
    %22 = arith.subf %21, %8 : vector<8x1xf32>
    %c8_i32 = arith.constant 8 : i32
    %23 = arith.muli %arg0, %c8_i32 : i32
    %24 = tpu.iota {dimensions = array<i32: 0>} : vector<8x1xi32>
    %25 = vector.broadcast %23 : i32 to vector<8x1xi32>
    %26 = arith.addi %25, %24 : vector<8x1xi32>
    %c8_i32_8 = arith.constant 8 : i32
    %27 = vector.broadcast %c8_i32_8 : i32 to vector<8x1xi32>
    %28 = arith.cmpi slt, %26, %27 : vector<8x1xi32>
    %cst_9 = arith.constant 0.000000e+00 : f32
    %29 = vector.broadcast %cst_9 : f32 to vector<8x1xf32>
    %30 = arith.subf %29, %13 : vector<8x1xf32>
    %cst_10 = arith.constant 0.000000e+00 : f32
    %31 = vector.broadcast %cst_10 : f32 to vector<8x1xf32>
    %32 = arith.select %28, %30, %31 : vector<8x1xi1>, vector<8x1xf32>
    %33 = vector.shape_cast %32 : vector<8x1xf32> to vector<1x8x1xf32>
    %cst_11 = arith.constant dense<0.000000e+00> : vector<1xf32>
    %34 = vector.multi_reduction <add>, %33, %cst_11 [1, 2] : vector<1x8x1xf32> to vector<1xf32>
    %35 = vector.shape_cast %34 : vector<1xf32> to vector<1x1x1xf32>
    %36 = vector.extract %35[0, 0, 0] : f32 from vector<1x1x1xf32>
    %cst_12 = arith.constant 0.000000e+00 : f32
    %37 = vector.broadcast %cst_12 : f32 to vector<8x1xf32>
    %38 = arith.subf %37, %22 : vector<8x1xf32>
    %cst_13 = arith.constant 0.000000e+00 : f32
    %39 = vector.broadcast %cst_13 : f32 to vector<8x1xf32>
    %40 = arith.select %28, %38, %39 : vector<8x1xi1>, vector<8x1xf32>
    %41 = vector.shape_cast %40 : vector<8x1xf32> to vector<1x8x1xf32>
    %cst_14 = arith.constant dense<0.000000e+00> : vector<1xf32>
    %42 = vector.multi_reduction <add>, %41, %cst_14 [1, 2] : vector<1x8x1xf32> to vector<1xf32>
    %43 = vector.shape_cast %42 : vector<1xf32> to vector<1x1x1xf32>
    %44 = vector.extract %43[0, 0, 0] : f32 from vector<1x1x1xf32>
    %45 = tpu.iota {dimensions = array<i32: 0>} : vector<8x128xi32>
    %46 = tpu.iota {dimensions = array<i32: 1>} : vector<8x128xi32>
    %c0_i32 = arith.constant 0 : i32
    %47 = vector.broadcast %c0_i32 : i32 to vector<8x128xi32>
    %48 = arith.cmpi eq, %45, %47 : vector<8x128xi32>
    %c0_i32_15 = arith.constant 0 : i32
    %49 = vector.broadcast %c0_i32_15 : i32 to vector<8x128xi32>
    %50 = arith.cmpi eq, %46, %49 : vector<8x128xi32>
    %51 = arith.andi %48, %50 : vector<8x128xi1>
    %c1_i32 = arith.constant 1 : i32
    %52 = vector.broadcast %c1_i32 : i32 to vector<8x128xi32>
    %53 = arith.cmpi eq, %46, %52 : vector<8x128xi32>
    %54 = arith.andi %48, %53 : vector<8x128xi1>
    %cst_16 = arith.constant 0.000000e+00 : f32
    %55 = vector.broadcast %44 : f32 to vector<8x128xf32>
    %56 = vector.broadcast %cst_16 : f32 to vector<8x128xf32>
    %57 = arith.select %54, %55, %56 : vector<8x128xi1>, vector<8x128xf32>
    %58 = vector.broadcast %36 : f32 to vector<8x128xf32>
    %59 = arith.select %51, %58, %57 : vector<8x128xi1>, vector<8x128xf32>
    %c0_17 = arith.constant 0 : index
    %c0_18 = arith.constant 0 : index
    %c0_19 = arith.constant 0 : index
    %60 = vector.load %arg3[%c0_17, %c0_18, %c0_19] : memref<1x8x128xf32, #tpu.memory_space<vmem>>, vector<1x8x128xf32>
    %61 = vector.shape_cast %60 : vector<1x8x128xf32> to vector<8x128xf32>
    %62 = vector.shape_cast %59 : vector<8x128xf32> to vector<1x8x128xf32>
    tpu.vector_store %arg3[%c0_17, %c0_18, %c0_19], %62 {strides = array<i32>} : memref<1x8x128xf32, #tpu.memory_space<vmem>>, vector<1x8x128xf32>,
    return
  }
  func.func @transform_0(%arg0: i32) -> (i32, i32) {
    %c0_i32 = arith.constant 0 : i32
    %c0_i32_0 = arith.constant 0 : i32
    return %arg0, %c0_i32 : i32, i32
  }
  func.func @transform_1(%arg0: i32) -> (i32, i32) {
    %c0_i32 = arith.constant 0 : i32
    %c0_i32_0 = arith.constant 0 : i32
    return %arg0, %c0_i32 : i32, i32
  }
  func.func @transform_2(%arg0: i32) -> (i32, i32, i32) {
    %c0_i32 = arith.constant 0 : i32
    %c0_i32_0 = arith.constant 0 : i32
    %c0_i32_1 = arith.constant 0 : i32
    return %arg0, %c0_i32, %c0_i32_0 : i32, i32, i32
  }
}

</mosaic_0001>

<llo_original>
// kernel: tpu_custom_call.1
$region0: #{tpu_custom_call.1}
  #allocation0 [shape = 'u32[]', space=smem, size = 0x4, offset = 0x4, fixed_abs, tag = 'smem constant byte address 0x4 - core index']
  #allocation1 [shape = 'u32[72,128]{1,0:T(1,128)}', space=vmem, size = 0x9000, scoped, tag = 'internal scratch']
  %s0 = inlined_call_operand.vmem [shape: f32[8,32], index: 0, kind: input, shape index: {}]
  %s1 = inlined_call_operand.vmem [shape: s32[8,1], index: 1, kind: input, shape index: {}]
  %s2 = inlined_call_operand.hbm [shape: f32[1,8,128], index: 2, kind: output, shape index: {}]
  %s3 = sld [smem:[#allocation0]]
  $region18: #{tpu_custom_call.1} parent=0
    _
  %s5 = ssub.s32 1, %s3
  %s6 = scalar_select 0, %s5, %s3
  $region1: #{tpu_custom_call.1} parent=0
    #allocation2 [shape = 'u8[4096]{0}', space=vmem, size = 0x1000, scoped, tag = 'output window, operand 0, single buffered']
    #allocation3 [shape = 's32[1]{0}', space=sflag, size = 0x4, scoped, tag = 'scoped memory for tpu_custom_call.1']
    %7 = vsyncpa [#allocation3], 0
    // Predicated region
    $region2: #{tpu_custom_call.1} parent=1 // pred_check
      _
    $region3: #{tpu_custom_call.1} parent=1 // pred_check_branch
      %9 = sbr.rel (0) target = $region5
    $region4: #{tpu_custom_call.1} parent=1 // pred_region
      _
    $region5: #{tpu_custom_call.1} parent=1 // pred_fallthru
      _
    // Predicated region
    $region6: #{tpu_custom_call.1} parent=1 // pred_check
      _
    $region7: #{tpu_custom_call.1} parent=1 // pred_check_branch
      %11 = sbr.rel (0) target = $region9
    $region8: #{tpu_custom_call.1} parent=1 // pred_region
      _
    $region9: #{tpu_custom_call.1} parent=1 // pred_fallthru
      _
    %v12 = vld [vmem:[%s0] sm:$0xff]
    %vm13 = vcmask 261120
    %v14 = vsel %vm13, %v12, -inf
    %15 = vmax.xlane.f32.xlu0 %v14
    %v16 = vpop.xlane.xlu0 %15
    %v17 = vsub.f32 %v12, %v16
    %v18 = vmul.f32 %v17, 1.442695
    %v19 = vpow.pop %v18
    %v20 = vsel %vm13, %v19, 0.0
    %21 = vadd.xlane.f32.xlu0 %v20
    %v22 = vpop.xlane.xlu0 %21
    %v23 = vlog2.pop %v22
    %v24 = vmul.f32 %v23, 0.6931472
    %v25 = vsel %vm13, %v17, 0.0
    %26 = vadd.xlane.f32.xlu0 %v25
    %v27 = vpop.xlane.xlu0 %26
    %v28 = vmul.f32 %v24, 32.0
    %v29 = vsub.f32 %v27, %v28
    %v30 = vld [vmem:[%s1] sm:$0xff]
    %v31 = vlaneseq
    %v32 = vand.u32 %v31, 127
    %33 = vset.pattern.permute.xlu0 0
    %34 = vperm.xlu0 %33, %v30
    %v35 = vpop.permute.xlu0 %34
    %vm36 = vcmp.eq.s32.totalorder %v32, %v35
    %v37 = vsel %vm36, %v17, 0.0
    %v38 = vsel %vm13, %v37, 0.0
    %39 = vadd.xlane.f32.xlu0 %v38
    %v40 = vpop.xlane.xlu0 %39
    %v41 = vsub.f32 %v40, %v24
    %s42 = smul.u32 0, 8
    %v43 = vlaneseq
    %v44 = vshrl.u32 %v43, 7
    %v45 = vstv %s42
    %v46 = vadd.s32 %v45, %v44
    %vm47 = vcmp.lt.s32.totalorder %v46, 8
    %v48 = vsub.f32 0.0, %v29
    %v49 = vsel %vm47, %v48, 0.0
    %vm50 = vcmask 7168
    %v51 = vsel %vm50, %v49, 0.0
    %52 = vadd.xlane.f32.xlu0 %v51
    %v53 = vpop.xlane.xlu0 %52
    %v54 = vrot.slane %v53, 4
    %v55 = vadd.f32 %v53, %v54
    %v56 = vrot.slane %v55, 2
    %v57 = vadd.f32 %v55, %v56
    %v58 = vrot.slane %v57, 1
    %v59 = vadd.f32 %v57, %v58
    %s60 = vtos %v59
    %v61 = vsub.f32 0.0, %v41
    %v62 = vsel %vm47, %v61, 0.0
    %v63 = vsel %vm50, %v62, 0.0
    %64 = vadd.xlane.f32.xlu0 %v63
    %v65 = vpop.xlane.xlu0 %64
    %v66 = vrot.slane %v65, 4
    %v67 = vadd.f32 %v65, %v66
    %v68 = vrot.slane %v67, 2
    %v69 = vadd.f32 %v67, %v68
    %v70 = vrot.slane %v69, 1
    %v71 = vadd.f32 %v69, %v70
    %s72 = vtos %v71
    %vm73 = vcmp.eq.s32.totalorder %v44, 0
    %vm74 = vcmp.eq.s32.totalorder %v32, 0
    %vm75 = vmand %vm73, %vm74
    %vm76 = vcmp.eq.s32.totalorder %v32, 1
    %vm77 = vmand %vm73, %vm76
    %v78 = vstv %s72
    %v79 = vsel %vm77, %v78, 0.0
    %v80 = vstv %s60
    %v81 = vsel %vm75, %v80, %v79
    %82 = vst [vmem:[#allocation2] sm:$0xff] %v81
    // Predicated region
    $region10: #{tpu_custom_call.1} parent=1 // pred_check
      _
    $region11: #{tpu_custom_call.1} parent=1 // pred_check_branch
      %84 = sbr.rel (0) target = $region13
    $region12: #{tpu_custom_call.1} parent=1 // pred_region
      %86 = vsyncadd [#allocation3], 0
      %s88 = sshll.u32 [#allocation2], 4
      %s89 = int_to_ptr.vmem [resolvable:$true] %s88
      %s90 = sshll.u32 %s2, 4
      %s91 = int_to_ptr.hbm [resolvable:$true] %s90
      %93 = dma.vmem_to_hbm [thread:$0]  %s89, 128, %s91, [#allocation3]
    $region13: #{tpu_custom_call.1} parent=1 // pred_fallthru
      _
    // Predicated region
    $region14: #{tpu_custom_call.1} parent=1 // pred_check
      _
    $region15: #{tpu_custom_call.1} parent=1 // pred_check_branch
      %95 = sbr.rel (0) target = $region17
    $region16: #{tpu_custom_call.1} parent=1 // pred_region
      %97 = dma.done [#allocation3], 128
    $region17: #{tpu_custom_call.1} parent=1 // pred_fallthru
      _
    %98 = vsyncpa [#allocation3], 1

</llo_original>
